<compile_context>
chip_gen: v7x
topology: tpu7x:2x2x1
jax: 0.10.0
libtpu: 0.0.40
codegen_flags: <defaults>
</compile_context>

<pallas_src>
import functools

import jax
import jax.numpy as jnp
import numpy as np
from jax.experimental import pallas as pl
from jax.experimental.pallas import tpu as pltpu

_LANE = 128
_SUBLANE = 8


def _round_up(x, m):
    return ((x + m - 1) // m) * m


def _vmem_capacity_bytes():
    """Physical VMEM per TensorCore; conservative v7x fallback (64 MiB)."""
    try:
        info = pltpu.get_tpu_info()
        cap = getattr(info, "vmem_capacity_bytes", None)
        if cap:
            return int(cap)
    except Exception:
        pass
    return 64 << 20


def _pick_tiles(B, C, HW, budget_f32_bytes):
    """Jointly pick (batch_tile, hw_tile) for the streaming pool kernel.

    budget_f32_bytes is an f32-equivalent per-buffer budget so the in-kernel
    f32 upcast of sub-32-bit inputs is accounted for.
    """
    c_pad = _round_up(C, _SUBLANE)

    def tile_f32_bytes(bt, ht):
        return bt * c_pad * _round_up(ht, _LANE) * 4

    # Legal lane tiles: full HW, or multiples of 128 that divide HW.
    ht_cands = sorted(
        {HW} | {d for d in range(_LANE, HW, _LANE) if HW % d == 0}, reverse=True
    )
    ht = None
    for cand in ht_cands:  # biggest first -> fewest grid steps (v5e/v6e)
        if tile_f32_bytes(1, cand) <= budget_f32_bytes:
            ht = cand
            break
    if ht is None:
        ht = min(ht_cands)

    # Batch tile: largest divisor of B that fits the budget, while keeping
    # grid[0] >= 2 whenever B >= 2 so the "parallel" batch axis can shard
    # across the two v7x TensorCores.
    bt_cap = max(1, B // 2) if B >= 2 else max(B, 1)
    bt = 1
    for d in range(min(B, bt_cap), 0, -1):
        if B % d == 0 and tile_f32_bytes(d, ht) <= budget_f32_bytes:
            bt = d
            break
    return bt, ht, c_pad


def _pool_kernel(x_ref, out_ref, *, inv_hw):
    # x_ref  : [bt, C, ht]  native dtype, NCHW-contiguous chunks (HW on lanes)
    # out_ref: [bt, 1, C]   f32, resident across the spatial grid axis
    si = pl.program_id(1)

    @pl.when(si == 0)
    def _init():
        out_ref[...] = jnp.zeros_like(out_ref)

    # Partial spatial sum over this HW tile, accumulated in f32 (explicit
    # upcast -> no low-precision partial-sum chain for bf16/fp8 inputs).
    partial = jnp.sum(x_ref[...].astype(jnp.float32), axis=2)      # [bt, C]
    out_ref[...] += partial.reshape(out_ref.shape)

    @pl.when(si == pl.num_programs(1) - 1)
    def _finalize():
        out_ref[...] = out_ref[...] * inv_hw


def _linear_kernel(p_ref, w_ref, b_ref, o_ref):
    # p_ref: [B, C] f32 pooled features; w_ref: [C, Np]; b_ref: [1, Np]
    o_ref[...] = (
        jnp.dot(p_ref[...], w_ref[...].astype(jnp.float32),
                preferred_element_type=jnp.float32)
        + b_ref[...].astype(jnp.float32)
    ).astype(o_ref.dtype)


def classifier_forward(x_nchw, weight, bias):
    """x_nchw: [B, C, H, W]; weight: [num_classes, C]; bias: [num_classes]."""
    B, C, H, W = x_nchw.shape
    num_classes = weight.shape[0]
    HW = H * W
    out_dtype = jnp.result_type(x_nchw.dtype, weight.dtype)

    # Free reshape (NO HBM transpose): NCHW -> [B, C, H*W].
    x = x_nchw.reshape(B, C, HW)
    itemsize = jnp.dtype(x.dtype).itemsize

    vmem_cap = _vmem_capacity_bytes()
    # Per-x-buffer budget (f32-equivalent): smaller on 64 MiB-VMEM parts.
    budget = (16 << 20) if vmem_cap >= (100 << 20) else (10 << 20)
    bt, ht, c_pad = _pick_tiles(B, C, HW, budget)
    grid = (B // bt, HW // ht)

    ht_pad = _round_up(ht, _LANE)
    x_tile_native = bt * c_pad * ht_pad * itemsize
    x_tile_f32 = bt * c_pad * ht_pad * 4               # in-kernel upcast temp
    pooled_tile = bt * _SUBLANE * _round_up(C, _LANE) * 4
    vmem_limit = 2 * x_tile_native + x_tile_f32 + 2 * pooled_tile + (2 << 20)
    vmem_limit = int(min(max(vmem_limit, 4 << 20), int(0.6 * vmem_cap)))

    pool_cost = pl.CostEstimate(
        flops=B * C * HW + B * C,
        transcendentals=0,
        bytes_accessed=x.size * itemsize + B * C * 4,
    )

    pooled3 = pl.pallas_call(
        functools.partial(_pool_kernel, inv_hw=float(1.0 / HW)),
        out_shape=jax.ShapeDtypeStruct((B, 1, C), jnp.float32),
        grid_spec=pltpu.PrefetchScalarGridSpec(
            num_scalar_prefetch=0,
            grid=grid,
            in_specs=[pl.BlockSpec((bt, C, ht), lambda bi, si: (bi, 0, si))],
            out_specs=pl.BlockSpec((bt, 1, C), lambda bi, si: (bi, 0, 0)),
        ),
        compiler_params=pltpu.CompilerParams(
            dimension_semantics=("parallel", "arbitrary"),
            vmem_limit_bytes=vmem_limit,
        ),
        cost_estimate=pool_cost,
    )(x)

    pooled = pooled3.reshape(B, C)  # free

    # Tiny FC layer as a separate one-shot kernel (weight never lives in VMEM
    # during the streaming phase).  Lane-pad num_classes for dense MXU / vst.
    Np = _round_up(max(num_classes, _LANE), _LANE)
    w_pad = jnp.zeros((C, Np), dtype=weight.dtype).at[:, :num_classes].set(weight.T)
    b_pad = jnp.zeros((1, Np), dtype=bias.dtype).at[0, :num_classes].set(bias)

    lin_bytes = (
        _round_up(B, _SUBLANE) * _round_up(C, _LANE) * 4
        + _round_up(C, _SUBLANE) * Np * jnp.dtype(weight.dtype).itemsize
        + _SUBLANE * Np * 4
        + _round_up(B, _SUBLANE) * Np * 4
    )
    lin_vmem = int(min(max(2 * lin_bytes + (2 << 20), 4 << 20), int(0.6 * vmem_cap)))

    scores_padded = pl.pallas_call(
        _linear_kernel,
        out_shape=jax.ShapeDtypeStruct((B, Np), jnp.float32),
        in_specs=[pl.BlockSpec(memory_space=pltpu.MemorySpace.VMEM)] * 3,
        out_specs=pl.BlockSpec(memory_space=pltpu.MemorySpace.VMEM),
        compiler_params=pltpu.CompilerParams(vmem_limit_bytes=lin_vmem),
    )(pooled, w_pad, b_pad)

    return scores_padded[:, :num_classes].astype(out_dtype)


if __name__ == "__main__":
    # Small shapes consistent with the module:
    #   batch=2, num_channels=32, spatial=16x16, num_classes=16
    B, C, H, W = 2, 32, 16, 16
    num_classes = 16

    key = jax.random.PRNGKey(0)
    kx, kw = jax.random.split(key)

    x = jax.random.normal(kx, (B, C, H, W), dtype=jnp.float32)

    # Deterministic parameter init matching the PyTorch __init__:
    #   weight.data.normal_(0.0, sqrt(2.0 / num_classes)); bias.data.zero_()
    weight = jax.random.normal(kw, (num_classes, C), dtype=jnp.float32) * np.sqrt(
        2.0 / num_classes
    )
    bias = jnp.zeros((num_classes,), dtype=jnp.float32)

    scores = classifier_forward(x, weight, bias)
    scores = jax.block_until_ready(scores)

    # Plain-JAX reference check of the forward pass.
    pooled_ref = jnp.mean(x.reshape(B, C, H * W), axis=-1)
    ref = pooled_ref @ weight.T + bias
    np.testing.assert_allclose(np.asarray(scores), np.asarray(ref), rtol=1e-5, atol=1e-5)

    print("KERNEL_OK")
</pallas_src>

<mosaic_0001>
module attributes {stable_mosaic.version = 11 : i64} {
  func.func @_pool_kernel(%arg0: i32, %arg1: i32, %arg2: memref<1x32x256xf32, #tpu.memory_space<vmem>>, %arg3: memref<1x1x32xf32, #tpu.memory_space<vmem>>) attributes {dimension_semantics = [#tpu.dimension_semantics<parallel>, #tpu.dimension_semantics<arbitrary>], iteration_bounds = array<i64: 2, 1>, scalar_prefetch = 0 : i64, scratch_operands = 0 : i64, tpu.core_type = #tpu.core_type<tc>, window_params = [{transform_indices = @transform_0, window_bounds = array<i64: 1, 32, 256>}, {transform_indices = @transform_1, window_bounds = array<i64: 1, 1, 32>}]} {
    %c0_i32 = arith.constant 0 : i32
    %0 = arith.cmpi eq, %arg1, %c0_i32 : i32
    %1 = arith.extui %0 : i1 to i32
    %c0_i32_0 = arith.constant 0 : i32
    %2 = arith.cmpi ne, %1, %c0_i32_0 : i32
    scf.if %2 {
      %cst_11 = arith.constant 0.000000e+00 : f32
      %12 = vector.broadcast %cst_11 : f32 to vector<1x1x32xf32>
      %c0_12 = arith.constant 0 : index
      %c0_13 = arith.constant 0 : index
      %c0_14 = arith.constant 0 : index
      %13 = vector.load %arg3[%c0_12, %c0_13, %c0_14] : memref<1x1x32xf32, #tpu.memory_space<vmem>>, vector<1x1x32xf32>
      tpu.vector_store %arg3[%c0_12, %c0_13, %c0_14], %12 {strides = array<i32>} : memref<1x1x32xf32, #tpu.memory_space<vmem>>, vector<1x1x32xf32>,
    } else {
    }
    %c0 = arith.constant 0 : index
    %c0_1 = arith.constant 0 : index
    %c0_2 = arith.constant 0 : index
    %3 = vector.load %arg2[%c0, %c0_1, %c0_2] : memref<1x32x256xf32, #tpu.memory_space<vmem>>, vector<1x32x256xf32>
    %cst = arith.constant dense<0.000000e+00> : vector<1x32xf32>
    %4 = vector.multi_reduction <add>, %3, %cst [2] : vector<1x32x256xf32> to vector<1x32xf32>
    %c0_3 = arith.constant 0 : index
    %c0_4 = arith.constant 0 : index
    %c0_5 = arith.constant 0 : index
    %5 = vector.load %arg3[%c0_3, %c0_4, %c0_5] : memref<1x1x32xf32, #tpu.memory_space<vmem>>, vector<1x1x32xf32>
    %6 = vector.shape_cast %4 : vector<1x32xf32> to vector<1x1x32xf32>
    %7 = arith.addf %5, %6 : vector<1x1x32xf32>
    %c0_6 = arith.constant 0 : index
    %c0_7 = arith.constant 0 : index
    %c0_8 = arith.constant 0 : index
    %8 = vector.load %arg3[%c0_6, %c0_7, %c0_8] : memref<1x1x32xf32, #tpu.memory_space<vmem>>, vector<1x1x32xf32>
    tpu.vector_store %arg3[%c0_6, %c0_7, %c0_8], %7 {strides = array<i32>} : memref<1x1x32xf32, #tpu.memory_space<vmem>>, vector<1x1x32xf32>,
    %c0_i32_9 = arith.constant 0 : i32
    %9 = arith.cmpi eq, %arg1, %c0_i32_9 : i32
    %10 = arith.extui %9 : i1 to i32
    %c0_i32_10 = arith.constant 0 : i32
    %11 = arith.cmpi ne, %10, %c0_i32_10 : i32
    scf.if %11 {
      %c0_11 = arith.constant 0 : index
      %c0_12 = arith.constant 0 : index
      %c0_13 = arith.constant 0 : index
      %12 = vector.load %arg3[%c0_11, %c0_12, %c0_13] : memref<1x1x32xf32, #tpu.memory_space<vmem>>, vector<1x1x32xf32>
      %cst_14 = arith.constant 3.906250e-03 : f32
      %13 = vector.broadcast %cst_14 : f32 to vector<1x1x32xf32>
      %14 = arith.mulf %12, %13 : vector<1x1x32xf32>
      %c0_15 = arith.constant 0 : index
      %c0_16 = arith.constant 0 : index
      %c0_17 = arith.constant 0 : index
      %15 = vector.load %arg3[%c0_15, %c0_16, %c0_17] : memref<1x1x32xf32, #tpu.memory_space<vmem>>, vector<1x1x32xf32>
      tpu.vector_store %arg3[%c0_15, %c0_16, %c0_17], %14 {strides = array<i32>} : memref<1x1x32xf32, #tpu.memory_space<vmem>>, vector<1x1x32xf32>,
    } else {
    }
    return
  }
  func.func @transform_0(%arg0: i32, %arg1: i32) -> (i32, i32, i32) {
    %c0_i32 = arith.constant 0 : i32
    %c0_i32_0 = arith.constant 0 : i32
    return %arg0, %c0_i32, %arg1 : i32, i32, i32
  }
  func.func @transform_1(%arg0: i32, %arg1: i32) -> (i32, i32, i32) {
    %c0_i32 = arith.constant 0 : i32
    %c0_i32_0 = arith.constant 0 : i32
    %c0_i32_1 = arith.constant 0 : i32
    return %arg0, %c0_i32, %c0_i32_0 : i32, i32, i32
  }
}

</mosaic_0001>

<llo_original>
// kernel: tpu_custom_call.1
$region0: #{tpu_custom_call.1}
  #allocation0 [shape = 'u32[]', space=smem, size = 0x4, offset = 0x4, fixed_abs, tag = 'smem constant byte address 0x4 - core index']
  #allocation1 [shape = 'u32[144,128]{1,0:T(1,128)}', space=vmem, size = 0x12000, scoped, tag = 'internal scratch']
  %s0 = inlined_call_operand.hbm [shape: f32[2,32,256], index: 0, kind: input, shape index: {}]
  %s1 = inlined_call_operand.hbm [shape: f32[2,1,32], index: 1, kind: output, shape index: {}]
  %s2 = sld [smem:[#allocation0]]
  $region49: #{tpu_custom_call.1} parent=0
    _
  %s4 = ssub.s32 1, %s2
  %s5 = scalar_select 0, %s4, %s2
  $region1: #{tpu_custom_call.1} parent=0
    #allocation2 [shape = 'u8[65536]{0}', space=vmem, size = 0x10000, scoped, tag = 'input window, operand 0']
    #allocation3 [shape = 's32[2]{0}', space=sflag, size = 0x8, scoped, tag = 'scoped memory for tpu_custom_call.1']
    #allocation4 [shape = 's32[2]{0}', space=sflag, size = 0x8, scoped, tag = 'scoped memory for tpu_custom_call.1']
    #allocation5 [shape = 'u8[1024]{0}', space=vmem, size = 0x400, scoped, tag = 'output window, operand 0']
    %6 = vsyncpa [#allocation3], 0
    %s7 = scalar_lea.sflag [#allocation3], 1
    %8 = vsyncpa %s7, 0
    %9 = vsyncpa [#allocation4], 0
    %s10 = scalar_lea.sflag [#allocation4], 1
    %11 = vsyncpa %s10, 0
    loop: start=0, step=1, limit=4
    $region2: #{tpu_custom_call.1} parent=1 // loop_pre_header
      _
    $region3: #{tpu_custom_call.1} parent=1 // loop_header
      %s13 = sphi 0, %s17
      %p14 = scmp.ge.s32.totalorder %s13, 4
      %s20 = sphi 0, %s32
      %s21 = sphi 0, %s28
      %s22 = sphi 0, %s20
      %s23 = sphi 0, %s21
      %s24 = sphi 0, %s22
      %s25 = sphi 0, %s23
      %s37 = sphi 0, %s39
      %s40 = sphi 0, %s37
      %s41 = sphi 0, %s40
      %s57 = sphi 0, %s41
      %s63 = sphi 0, %s65
      %s66 = sphi 0, %s63
      %s67 = sphi 0, %s66
      %s83 = sphi 0, %s67
    $region4: #{tpu_custom_call.1} parent=1 // loop_header_branch
      %16 = sbr.rel (%p14) target = $region8
    $region5: #{tpu_custom_call.1} parent=1 // loop_body
      %s18 = ssub.s32 %s13, 1
      %s19 = ssub.s32 %s13, 2
      %s26 = sadd.s32 1, %s21
      %p27 = scmp.ge.s32.totalorder %s26, 1
      %s28 = scalar_select %p27, 0, %s26
      %s29 = sadd.s32 1, %s20
      %s30 = scalar_select %p27, %s29, %s20
      %p31 = scmp.ge.s32.totalorder %s30, 2
      %s32 = scalar_select %p31, 0, %s30
      %s33 = ssub.s32 %s20, %s32
      %s34 = ssub.s32 %s21, %s28
      %s35 = sor.u32 %s33, %s34
      %p36 = scmp.eq.s32.totalorder %s35, 0
      %s38 = sadd.s32 %s37, 1
      %s39 = scalar_select %p36, %s37, %s38
      %p42 = pneg %p36
      %p43 = scmp.eq.s32.totalorder %s13, 1
      %p44 = por %p42, %p43
      %p45 = scmp.ne.s32.totalorder %s37, %s40
      %p46 = scmp.eq.s32.totalorder %s13, 0
      %p47 = por %p45, %p46
      %p48 = scmp.ne.s32.totalorder %s37, %s40
      %p49 = scmp.eq.s32.totalorder %s18, 1
      %p50 = por %p48, %p49
      %p51 = scmp.ne.s32.totalorder %s40, %s41
      %p52 = scmp.eq.s32.totalorder %s18, 0
      %p53 = por %p51, %p52
      %p54 = scmp.ne.s32.totalorder %s40, %s41
      %p55 = scmp.eq.s32.totalorder %s19, 1
      %p56 = por %p54, %p55
      %p58 = scmp.ne.s32.totalorder %s41, %s57
      %p59 = scmp.eq.s32.totalorder %s19, 0
      %p60 = por %p58, %p59
      %s61 = ssub.s32 %s20, %s32
      %p62 = scmp.eq.s32.totalorder %s61, 0
      %s64 = sadd.s32 %s63, 1
      %s65 = scalar_select %p62, %s63, %s64
      %p68 = pneg %p62
      %p69 = scmp.eq.s32.totalorder %s13, 1
      %p70 = por %p68, %p69
      %p71 = scmp.ne.s32.totalorder %s63, %s66
      %p72 = scmp.eq.s32.totalorder %s13, 0
      %p73 = por %p71, %p72
      %p74 = scmp.ne.s32.totalorder %s63, %s66
      %p75 = scmp.eq.s32.totalorder %s18, 1
      %p76 = por %p74, %p75
      %p77 = scmp.ne.s32.totalorder %s66, %s67
      %p78 = scmp.eq.s32.totalorder %s18, 0
      %p79 = por %p77, %p78
      %p80 = scmp.ne.s32.totalorder %s66, %s67
      %p81 = scmp.eq.s32.totalorder %s19, 1
      %p82 = por %p80, %p81
      %p84 = scmp.ne.s32.totalorder %s67, %s83
      %p85 = scmp.eq.s32.totalorder %s19, 0
      %p86 = por %p84, %p85
      %p87 = scmp.le.s32.totalorder 1, %s13
      %p88 = scmp.lt.s32.totalorder %s13, 3
      %p89 = pnand %p87, %p88
      %p90 = pneg %p89
      // Predicated region
      $region9: #{tpu_custom_call.1} parent=5 // pred_check
        _
      $region10: #{tpu_custom_call.1} parent=5 // pred_check_branch
        %92 = sbr.rel (%p89) target = $region12
      $region11: #{tpu_custom_call.1} parent=5 // pred_region
        %s93 = ssub.s32 %s13, 1
      $region12: #{tpu_custom_call.1} parent=5 // pred_fallthru
        _
      %p94 = scmp.lt.s32.totalorder %s13, 2
      // Predicated region
      $region13: #{tpu_custom_call.1} parent=5 // pred_check
        %p95 = pneg %p94
      $region14: #{tpu_custom_call.1} parent=5 // pred_check_branch
        %97 = sbr.rel (%p95) target = $region16
      $region15: #{tpu_custom_call.1} parent=5 // pred_region
        // Predicated region
        $region17: #{tpu_custom_call.1} parent=15 // pred_check
          %p98 = pneg %p47
        $region18: #{tpu_custom_call.1} parent=15 // pred_check_branch
          %100 = sbr.rel (%p98) target = $region20
        $region19: #{tpu_custom_call.1} parent=15 // pred_region
          %s101 = sand.u32 %s37, 1
          %s102 = scalar_lea.sflag [#allocation3], %s101
          %s103 = sand.u32 %s37, 1
          %s104 = smul.addr %s103, 64
          %s105 = scalar_lea.vmem [#allocation2], %s104
          %s106 = smul.u32 2, %s21
          %s108 = ssub.s32 1024, 1024
          %109 = vsyncadd %s102, %s108
          %s110 = smul.addr %s20, 8
          %s111 = sadd.s32 %s106, %s110
          %s112 = smul.addr %s111, 128
          %s113 = scalar_lea.hbm %s0, %s112
          %s114 = sshll.u32 %s105, 4
          %s115 = int_to_ptr.vmem [resolvable:$true] %s114
          %120 = dma.hbm_to_vmem [thread:$0]  %s113, 1024, %s115, %s102, 256, 256, 16
        $region20: #{tpu_custom_call.1} parent=15 // pred_fallthru
          _
      $region16: #{tpu_custom_call.1} parent=5 // pred_fallthru
        _
      %p121 = scmp.le.s32.totalorder 1, %s13
      %p122 = scmp.lt.s32.totalorder %s13, 3
      %p123 = pnand %p121, %p122
      %p124 = pneg %p123
      // Predicated region
      $region21: #{tpu_custom_call.1} parent=5 // pred_check
        _
      $region22: #{tpu_custom_call.1} parent=5 // pred_check_branch
        %126 = sbr.rel (%p123) target = $region24
      $region23: #{tpu_custom_call.1} parent=5 // pred_region
        %s127 = ssub.s32 %s13, 1
        %s128 = sand.u32 %s40, 1
        %s129 = scalar_lea.sflag [#allocation3], %s128
        %s130 = sand.u32 %s40, 1
        %s131 = smul.addr %s130, 64
        %s132 = scalar_lea.vmem [#allocation2], %s131
        // Predicated region
        $region25: #{tpu_custom_call.1} parent=23 // pred_check
          %p133 = pneg %p53
        $region26: #{tpu_custom_call.1} parent=23 // pred_check_branch
          %135 = sbr.rel (%p133) target = $region28
        $region27: #{tpu_custom_call.1} parent=23 // pred_region
          %136 = dma.done %s129, 1024
        $region28: #{tpu_custom_call.1} parent=23 // pred_fallthru
          _
        %s137 = sand.u32 %s40, 1
        %s138 = scalar_lea.sflag [#allocation3], %s137
        %s139 = sand.u32 %s40, 1
        %s140 = smul.addr %s139, 64
        %s141 = scalar_lea.vmem [#allocation2], %s140
        %p142 = pneg %p53
        %p143 = pneg %p50
        %p144 = pneg %p79
        %p145 = pneg %p76
        %s146 = sand.u32 %s66, 1
        %s147 = scalar_lea.sflag [#allocation4], %s146
        %s148 = sand.u32 %s66, 1
        %s149 = scalar_lea.vmem [#allocation5], %s148
        %s150 = smul.u32 2, %s23
        %p151 = scmp.eq.s32.totalorder %s23, 0
        // Predicated region
        $region29: #{tpu_custom_call.1} parent=23 // pred_check
          %p152 = pneg %p151
        $region30: #{tpu_custom_call.1} parent=23 // pred_check_branch
          %154 = sbr.rel (%p152) target = $region32
        $region31: #{tpu_custom_call.1} parent=23 // pred_region
          %vm155 = vcmask 253952
          %156 = vst.msk [vmem:[%s149] sm:$0x1] %vm155, 0.0
        $region32: #{tpu_custom_call.1} parent=23 // pred_fallthru
          _
        %v157 = vld [vmem:[%s132] sm:$0xff]
        %v158 = vld [vmem:[%s132 + $0x8] sm:$0xff]
        %v159 = vld [vmem:[%s132 + $0x10] sm:$0xff]
        %v160 = vld [vmem:[%s132 + $0x18] sm:$0xff]
        %v161 = vld [vmem:[%s132 + $0x20] sm:$0xff]
        %v162 = vld [vmem:[%s132 + $0x28] sm:$0xff]
        %v163 = vld [vmem:[%s132 + $0x30] sm:$0xff]
        %v164 = vld [vmem:[%s132 + $0x38] sm:$0xff]
        %v165 = vadd.f32 %v157, %v158
        %166 = vadd.xlane.f32.xlu0 %v165
        %v167 = vpop.xlane.xlu0 %166
        %v168 = vadd.f32 %v159, %v160
        %169 = vadd.xlane.f32.xlu0 %v168
        %v170 = vpop.xlane.xlu0 %169
        %v171 = vadd.f32 %v161, %v162
        %172 = vadd.xlane.f32.xlu0 %v171
        %v173 = vpop.xlane.xlu0 %172
        %v174 = vadd.f32 %v163, %v164
        %175 = vadd.xlane.f32.xlu0 %v174
        %v176 = vpop.xlane.xlu0 %175
        %v177 = vld [vmem:[%s149] sm:$0x1]
        %v182 = vlaneseq
        %v183 = vshrl.u32 %v182, 7
        %v184 = vsub.s32 0, %v183
        %v185 = vrot.slane %v167, %v184
        %v186 = vlaneseq
        %v187 = vshrl.u32 %v186, 7
        %v188 = vsub.s32 1, %v187
        %v189 = vrot.slane %v167, %v188
        %v190 = vlaneseq
        %v191 = vshrl.u32 %v190, 7
        %v192 = vsub.s32 2, %v191
        %v193 = vrot.slane %v167, %v192
        %v194 = vlaneseq
        %v195 = vshrl.u32 %v194, 7
        %v196 = vsub.s32 3, %v195
        %v197 = vrot.slane %v167, %v196
        %v198 = vlaneseq
        %v199 = vshrl.u32 %v198, 7
        %v200 = vsub.s32 4, %v199
        %v201 = vrot.slane %v167, %v200
        %v202 = vlaneseq
        %v203 = vshrl.u32 %v202, 7
        %v204 = vsub.s32 5, %v203
        %v205 = vrot.slane %v167, %v204
        %v206 = vlaneseq
        %v207 = vshrl.u32 %v206, 7
        %v208 = vsub.s32 6, %v207
        %v209 = vrot.slane %v167, %v208
        %v210 = vlaneseq
        %v211 = vshrl.u32 %v210, 7
        %v212 = vsub.s32 7, %v211
        %v213 = vrot.slane %v167, %v212
        %v214 = vlaneseq
        %v215 = vshrl.u32 %v214, 7
        %v216 = vsub.s32 0, %v215
        %v217 = vrot.slane %v170, %v216
        %v218 = vlaneseq
        %v219 = vshrl.u32 %v218, 7
        %v220 = vsub.s32 1, %v219
        %v221 = vrot.slane %v170, %v220
        %v222 = vlaneseq
        %v223 = vshrl.u32 %v222, 7
        %v224 = vsub.s32 2, %v223
        %v225 = vrot.slane %v170, %v224
        %v226 = vlaneseq
        %v227 = vshrl.u32 %v226, 7
        %v228 = vsub.s32 3, %v227
        %v229 = vrot.slane %v170, %v228
        %v230 = vlaneseq
        %v231 = vshrl.u32 %v230, 7
        %v232 = vsub.s32 4, %v231
        %v233 = vrot.slane %v170, %v232
        %v234 = vlaneseq
        %v235 = vshrl.u32 %v234, 7
        %v236 = vsub.s32 5, %v235
        %v237 = vrot.slane %v170, %v236
        %v238 = vlaneseq
        %v239 = vshrl.u32 %v238, 7
        %v240 = vsub.s32 6, %v239
        %v241 = vrot.slane %v170, %v240
        %v242 = vlaneseq
        %v243 = vshrl.u32 %v242, 7
        %v244 = vsub.s32 7, %v243
        %v245 = vrot.slane %v170, %v244
        %v246 = vlaneseq
        %v247 = vshrl.u32 %v246, 7
        %v248 = vsub.s32 0, %v247
        %v249 = vrot.slane %v173, %v248
        %v250 = vlaneseq
        %v251 = vshrl.u32 %v250, 7
        %v252 = vsub.s32 1, %v251
        %v253 = vrot.slane %v173, %v252
        %v254 = vlaneseq
        %v255 = vshrl.u32 %v254, 7
        %v256 = vsub.s32 2, %v255
        %v257 = vrot.slane %v173, %v256
        %v258 = vlaneseq
        %v259 = vshrl.u32 %v258, 7
        %v260 = vsub.s32 3, %v259
        %v261 = vrot.slane %v173, %v260
        %v262 = vlaneseq
        %v263 = vshrl.u32 %v262, 7
        %v264 = vsub.s32 4, %v263
        %v265 = vrot.slane %v173, %v264
        %v266 = vlaneseq
        %v267 = vshrl.u32 %v266, 7
        %v268 = vsub.s32 5, %v267
        %v269 = vrot.slane %v173, %v268
        %v270 = vlaneseq
        %v271 = vshrl.u32 %v270, 7
        %v272 = vsub.s32 6, %v271
        %v273 = vrot.slane %v173, %v272
        %v274 = vlaneseq
        %v275 = vshrl.u32 %v274, 7
        %v276 = vsub.s32 7, %v275
        %v277 = vrot.slane %v173, %v276
        %v278 = vlaneseq
        %v279 = vshrl.u32 %v278, 7
        %v280 = vsub.s32 0, %v279
        %v281 = vrot.slane %v176, %v280
        %v282 = vlaneseq
        %v283 = vshrl.u32 %v282, 7
        %v284 = vsub.s32 1, %v283
        %v285 = vrot.slane %v176, %v284
        %v286 = vlaneseq
        %v287 = vshrl.u32 %v286, 7
        %v288 = vsub.s32 2, %v287
        %v289 = vrot.slane %v176, %v288
        %v290 = vlaneseq
        %v291 = vshrl.u32 %v290, 7
        %v292 = vsub.s32 3, %v291
        %v293 = vrot.slane %v176, %v292
        %v294 = vlaneseq
        %v295 = vshrl.u32 %v294, 7
        %v296 = vsub.s32 4, %v295
        %v297 = vrot.slane %v176, %v296
        %v298 = vlaneseq
        %v299 = vshrl.u32 %v298, 7
        %v300 = vsub.s32 5, %v299
        %v301 = vrot.slane %v176, %v300
        %v302 = vlaneseq
        %v303 = vshrl.u32 %v302, 7
        %v304 = vsub.s32 6, %v303
        %v305 = vrot.slane %v176, %v304
        %v306 = vlaneseq
        %v307 = vshrl.u32 %v306, 7
        %v308 = vsub.s32 7, %v307
        %v309 = vrot.slane %v176, %v308
        %v310 = vcombine.low %v185, %v189
        %v311 = vcombine.low %v193, %v197
        %v312 = vcombine.low %v201, %v205
        %v313 = vcombine.low %v209, %v213
        %v315 = vunpack.c.l.s4 1966171168
        %v316 = vunpack.c.0.s8 %v315
        %v317 = vlaneseq
        %v318 = vshrl.u32 %v317, 7
        %v319 = vsub.s32 %v316, %v318
        %v320 = vrot.slane %v310, %v319
        %v322 = vunpack.c.l.s4 1966171168
        %v323 = vunpack.c.0.s8 %v322
        %v324 = vlaneseq
        %v325 = vshrl.u32 %v324, 7
        %v326 = vsub.s32 %v323, %v325
        %v327 = vrot.slane %v311, %v326
        %v329 = vunpack.c.l.s4 1966171168
        %v330 = vunpack.c.0.s8 %v329
        %v331 = vlaneseq
        %v332 = vshrl.u32 %v331, 7
        %v333 = vsub.s32 %v330, %v332
        %v334 = vrot.slane %v312, %v333
        %v336 = vunpack.c.l.s4 1966171168
        %v337 = vunpack.c.0.s8 %v336
        %v338 = vlaneseq
        %v339 = vshrl.u32 %v338, 7
        %v340 = vsub.s32 %v337, %v339
        %v341 = vrot.slane %v313, %v340
        %v342 = vcombine.low %v320, %v327
        %v343 = vcombine.low %v334, %v341
        %v345 = vunpack.c.l.s4 1966171168
        %v346 = vunpack.c.0.s8 %v345
        %v347 = vlaneseq
        %v348 = vshrl.u32 %v347, 7
        %v349 = vsub.s32 %v346, %v348
        %v350 = vrot.slane %v342, %v349
        %v352 = vunpack.c.l.s4 1966171168
        %v353 = vunpack.c.0.s8 %v352
        %v354 = vlaneseq
        %v355 = vshrl.u32 %v354, 7
        %v356 = vsub.s32 %v353, %v355
        %v357 = vrot.slane %v343, %v356
        %v358 = vcombine.low %v350, %v357
        %v359 = vcombine.low %v217, %v221
        %v360 = vcombine.low %v225, %v229
        %v361 = vcombine.low %v233, %v237
        %v362 = vcombine.low %v241, %v245
        %v364 = vunpack.c.l.s4 1966171168
        %v365 = vunpack.c.0.s8 %v364
        %v366 = vlaneseq
        %v367 = vshrl.u32 %v366, 7
        %v368 = vsub.s32 %v365, %v367
        %v369 = vrot.slane %v359, %v368
        %v371 = vunpack.c.l.s4 1966171168
        %v372 = vunpack.c.0.s8 %v371
        %v373 = vlaneseq
        %v374 = vshrl.u32 %v373, 7
        %v375 = vsub.s32 %v372, %v374
        %v376 = vrot.slane %v360, %v375
        %v378 = vunpack.c.l.s4 1966171168
        %v379 = vunpack.c.0.s8 %v378
        %v380 = vlaneseq
        %v381 = vshrl.u32 %v380, 7
        %v382 = vsub.s32 %v379, %v381
        %v383 = vrot.slane %v361, %v382
        %v385 = vunpack.c.l.s4 1966171168
        %v386 = vunpack.c.0.s8 %v385
        %v387 = vlaneseq
        %v388 = vshrl.u32 %v387, 7
        %v389 = vsub.s32 %v386, %v388
        %v390 = vrot.slane %v362, %v389
        %v391 = vcombine.low %v369, %v376
        %v392 = vcombine.low %v383, %v390
        %v394 = vunpack.c.l.s4 1966171168
        %v395 = vunpack.c.0.s8 %v394
        %v396 = vlaneseq
        %v397 = vshrl.u32 %v396, 7
        %v398 = vsub.s32 %v395, %v397
        %v399 = vrot.slane %v391, %v398
        %v401 = vunpack.c.l.s4 1966171168
        %v402 = vunpack.c.0.s8 %v401
        %v403 = vlaneseq
        %v404 = vshrl.u32 %v403, 7
        %v405 = vsub.s32 %v402, %v404
        %v406 = vrot.slane %v392, %v405
        %v407 = vcombine.low %v399, %v406
        %v408 = vcombine.low %v249, %v253
        %v409 = vcombine.low %v257, %v261
        %v410 = vcombine.low %v265, %v269
        %v411 = vcombine.low %v273, %v277
        %v413 = vunpack.c.l.s4 1966171168
        %v414 = vunpack.c.0.s8 %v413
        %v415 = vlaneseq
        %v416 = vshrl.u32 %v415, 7
        %v417 = vsub.s32 %v414, %v416
        %v418 = vrot.slane %v408, %v417
        %v420 = vunpack.c.l.s4 1966171168
        %v421 = vunpack.c.0.s8 %v420
        %v422 = vlaneseq
        %v423 = vshrl.u32 %v422, 7
        %v424 = vsub.s32 %v421, %v423
        %v425 = vrot.slane %v409, %v424
        %v427 = vunpack.c.l.s4 1966171168
        %v428 = vunpack.c.0.s8 %v427
        %v429 = vlaneseq
        %v430 = vshrl.u32 %v429, 7
        %v431 = vsub.s32 %v428, %v430
        %v432 = vrot.slane %v410, %v431
        %v434 = vunpack.c.l.s4 1966171168
        %v435 = vunpack.c.0.s8 %v434
        %v436 = vlaneseq
        %v437 = vshrl.u32 %v436, 7
        %v438 = vsub.s32 %v435, %v437
        %v439 = vrot.slane %v411, %v438
        %v440 = vcombine.low %v418, %v425
        %v441 = vcombine.low %v432, %v439
        %v443 = vunpack.c.l.s4 1966171168
        %v444 = vunpack.c.0.s8 %v443
        %v445 = vlaneseq
        %v446 = vshrl.u32 %v445, 7
        %v447 = vsub.s32 %v444, %v446
        %v448 = vrot.slane %v440, %v447
        %v450 = vunpack.c.l.s4 1966171168
        %v451 = vunpack.c.0.s8 %v450
        %v452 = vlaneseq
        %v453 = vshrl.u32 %v452, 7
        %v454 = vsub.s32 %v451, %v453
        %v455 = vrot.slane %v441, %v454
        %v456 = vcombine.low %v448, %v455
        %v457 = vcombine.low %v281, %v285
        %v458 = vcombine.low %v289, %v293
        %v459 = vcombine.low %v297, %v301
        %v460 = vcombine.low %v305, %v309
        %v462 = vunpack.c.l.s4 1966171168
        %v463 = vunpack.c.0.s8 %v462
        %v464 = vlaneseq
        %v465 = vshrl.u32 %v464, 7
        %v466 = vsub.s32 %v463, %v465
        %v467 = vrot.slane %v457, %v466
        %v469 = vunpack.c.l.s4 1966171168
        %v470 = vunpack.c.0.s8 %v469
        %v471 = vlaneseq
        %v472 = vshrl.u32 %v471, 7
        %v473 = vsub.s32 %v470, %v472
        %v474 = vrot.slane %v458, %v473
        %v476 = vunpack.c.l.s4 1966171168
        %v477 = vunpack.c.0.s8 %v476
        %v478 = vlaneseq
        %v479 = vshrl.u32 %v478, 7
        %v480 = vsub.s32 %v477, %v479
        %v481 = vrot.slane %v459, %v480
        %v483 = vunpack.c.l.s4 1966171168
        %v484 = vunpack.c.0.s8 %v483
        %v485 = vlaneseq
        %v486 = vshrl.u32 %v485, 7
        %v487 = vsub.s32 %v484, %v486
        %v488 = vrot.slane %v460, %v487
        %v489 = vcombine.low %v467, %v474
        %v490 = vcombine.low %v481, %v488
        %v492 = vunpack.c.l.s4 1966171168
        %v493 = vunpack.c.0.s8 %v492
        %v494 = vlaneseq
        %v495 = vshrl.u32 %v494, 7
        %v496 = vsub.s32 %v493, %v495
        %v497 = vrot.slane %v489, %v496
        %v499 = vunpack.c.l.s4 1966171168
        %v500 = vunpack.c.0.s8 %v499
        %v501 = vlaneseq
        %v502 = vshrl.u32 %v501, 7
        %v503 = vsub.s32 %v500, %v502
        %v504 = vrot.slane %v490, %v503
        %v505 = vcombine.low %v497, %v504
        %506 = vset.pattern.permute.xlu0 0
        %507 = vperm.xlu0 %506, %v358
        %v508 = vpop.permute.xlu0 %507
        %509 = vset.pattern.permute.xlu0 0
        %510 = vperm.xlu0 %509, %v407
        %v511 = vpop.permute.xlu0 %510
        %512 = vset.pattern.permute.xlu0 0
        %513 = vperm.xlu0 %512, %v456
        %v514 = vpop.permute.xlu0 %513
        %515 = vset.pattern.permute.xlu0 0
        %516 = vperm.xlu0 %515, %v505
        %v517 = vpop.permute.xlu0 %516
        %v518 = vlaneseq
        %v519 = vand.u32 %v518, 127
        %v520 = vlaneseq
        %v521 = vshrl.u32 %v520, 7
        %v522 = vsub.s32 %v519, %v521
        %v523 = vrot.slane %v508, %v522
        %v524 = vadd.s32 %v519, 4294967288
        %v525 = vlaneseq
        %v526 = vshrl.u32 %v525, 7
        %v527 = vsub.s32 %v524, %v526
        %v528 = vrot.slane %v511, %v527
        %vm529 = vcmask 130112
        %v530 = vsel %vm529, %v528, %v523
        %v531 = vadd.s32 %v519, 4294967280
        %v532 = vlaneseq
        %v533 = vshrl.u32 %v532, 7
        %v534 = vsub.s32 %v531, %v533
        %v535 = vrot.slane %v514, %v534
        %vm536 = vcmask 195712
        %v537 = vsel %vm536, %v535, %v530
        %v538 = vadd.s32 %v519, 4294967272
        %v539 = vlaneseq
        %v540 = vshrl.u32 %v539, 7
        %v541 = vsub.s32 %v538, %v540
        %v542 = vrot.slane %v517, %v541
        %vm543 = vcmask 261312
        %v544 = vsel %vm543, %v542, %v537
        %v546 = vunpack.c.l.s4 1966171168
        %v547 = vunpack.c.0.s8 %v546
        %v548 = vlaneseq
        %v549 = vshrl.u32 %v548, 7
        %v550 = vsub.s32 %v547, %v549
        %v551 = vrot.slane %v544, %v550
        %v553 = vunpack.c.l.s4 1966171168
        %v554 = vunpack.c.0.s8 %v553
        %v555 = vlaneseq
        %v556 = vshrl.u32 %v555, 7
        %v557 = vsub.s32 %v554, %v556
        %v558 = vrot.slane %v551, %v557
        %v560 = vadd.f32 %v177, %v558
        %vm561 = vcmask 253952
        %562 = vst.msk [vmem:[%s149] sm:$0x1] %vm561, %v560
        // Predicated region
        $region33: #{tpu_custom_call.1} parent=23 // pred_check
          %p563 = pneg %p151
        $region34: #{tpu_custom_call.1} parent=23 // pred_check_branch
          %565 = sbr.rel (%p563) target = $region36
        $region35: #{tpu_custom_call.1} parent=23 // pred_region
          %v566 = vld [vmem:[%s149] sm:$0x1]
          %v567 = vmul.f32 %v566, 0.00390625
          %568 = vst.msk [vmem:[%s149] sm:$0x1] %vm561, %v567
        $region36: #{tpu_custom_call.1} parent=23 // pred_fallthru
          _
        %s569 = sand.u32 %s66, 1
        %s570 = scalar_lea.sflag [#allocation4], %s569
        %s571 = sand.u32 %s66, 1
        %s572 = scalar_lea.vmem [#allocation5], %s571
        // Predicated region
        $region37: #{tpu_custom_call.1} parent=23 // pred_check
          %p573 = pneg %p76
        $region38: #{tpu_custom_call.1} parent=23 // pred_check_branch
          %575 = sbr.rel (%p573) target = $region40
        $region39: #{tpu_custom_call.1} parent=23 // pred_region
          %s577 = ssub.s32 16, 16
          %578 = vsyncadd %s570, %s577
          %s579 = smul.addr %s22, 16
          %s580 = scalar_lea.hbm %s1, %s579
          %s582 = sshll.u32 %s572, 4
          %s583 = int_to_ptr.vmem [resolvable:$true] %s582
          %585 = dma.vmem_to_hbm [thread:$0]  %s583, 16, %s580, %s570
        $region40: #{tpu_custom_call.1} parent=23 // pred_fallthru
          _
      $region24: #{tpu_custom_call.1} parent=5 // pred_fallthru
        _
      %p586 = scmp.le.s32.totalorder 2, %s13
      // Predicated region
      $region41: #{tpu_custom_call.1} parent=5 // pred_check
        %p587 = pneg %p586
      $region42: #{tpu_custom_call.1} parent=5 // pred_check_branch
        %589 = sbr.rel (%p587) target = $region44
      $region43: #{tpu_custom_call.1} parent=5 // pred_region
        %s590 = ssub.s32 %s13, 2
        // Predicated region
        $region45: #{tpu_custom_call.1} parent=43 // pred_check
          %p591 = pneg %p82
        $region46: #{tpu_custom_call.1} parent=43 // pred_check_branch
          %593 = sbr.rel (%p591) target = $region48
        $region47: #{tpu_custom_call.1} parent=43 // pred_region
          %s594 = sand.u32 %s67, 1
          %s595 = scalar_lea.sflag [#allocation4], %s594
          %s596 = sand.u32 %s67, 1
          %s597 = scalar_lea.vmem [#allocation5], %s596
          %598 = dma.done %s595, 16
        $region48: #{tpu_custom_call.1} parent=43 // pred_fallthru
          _
      $region44: #{tpu_custom_call.1} parent=5 // pred_fallthru
        _
    $region6: #{tpu_custom_call.1} parent=1 // loop_footer
      %s17 = sadd.s32 1, %s13
    $region7: #{tpu_custom_call.1} parent=1 // loop_footer_branch
      %12 = sbr.rel target = $region3
    $region8: #{tpu_custom_call.1} parent=1 // loop_exit
      _
    %599 = vsyncpa [#allocation3], 1
    %s600 = scalar_lea.sflag [#allocation3], 1
    %601 = vsyncpa %s600, 1
    %602 = vsyncpa [#allocation4], 1
    %s603 = scalar_lea.sflag [#allocation4], 1
    %604 = vsyncpa %s603, 1

</llo_original>
